<compile_context>
chip_gen: v5e
topology: v5e:2x2
jax: 0.10.0
libtpu: 0.0.40
codegen_flags: <defaults>
</compile_context>

<pallas_src>
import functools

import jax
import jax.numpy as jnp
import numpy as np
from jax.experimental import pallas as pl
from jax.experimental.pallas import tpu as pltpu

# ---- small, module-consistent config (DeepseekConfig analog, shrunk & lane-aligned) ----
HIDDEN = 128          # hidden_size            (lane-aligned stand-in for 576)
MOE_INTER = 128       # moe_intermediate_size  (lane-aligned stand-in for 384)
N_EXPERTS = 8         # n_routed_experts       (stand-in for 32)
TOP_K = 3             # num_experts_per_tok
N_SHARED = 1          # n_shared_experts (shared intermediate = MOE_INTER * N_SHARED)
BATCH, SEQ = 2, 32
TOKEN_TILE = 32       # row tile for the toy run; production: 128 (v5e) / 256-512 (v6e, v7x)


# ------------------------- expert MLP kernel -------------------------
# One grid step = one (row-tile, expert) pair. The expert id for each block is read from
# the scalar-prefetched `block_expert` array inside the weight index_maps, so only the
# routed expert's weights are DMA'd for this tile.
def moe_expert_kernel(be_ref, x_ref, wg_ref, wu_ref, wd_ref, w_ref, o_ref):
    del be_ref  # expert selection happens entirely in the index_maps
    x = x_ref[...]                                                    # (tt, H)  bf16
    g = jnp.dot(x, wg_ref[...], preferred_element_type=jnp.float32)   # (tt, I)  f32  (MXU)
    u = jnp.dot(x, wu_ref[...], preferred_element_type=jnp.float32)   # (tt, I)  f32  (MXU)
    h = (g * jax.nn.sigmoid(g) * u).astype(x.dtype)                   # SiLU(g)*u -> bf16 (VPU+EUP)
    d = jnp.dot(h, wd_ref[...], preferred_element_type=jnp.float32)   # (tt, H)  f32  (MXU)
    o_ref[...] = w_ref[...] * d                                       # per-row routing weight


# ------------------------------ wrapper ------------------------------
def deepseek_moe(x, gate_w, wg, wu, wd, *, top_k=TOP_K, tt=TOKEN_TILE):
    """x: [B,S,H]; gate_w: [E,H]; wg/wu: [E+1,H,I]; wd: [E+1,I,H] (slot E = shared expert)."""
    B, S, H = x.shape
    T = B * S
    E = gate_w.shape[0]
    E1, _, I = wg.shape
    assert E1 == E + 1, "weights must stack routed experts plus one shared expert (slot E)"
    K = top_k
    assert tt % 8 == 0 and tt >= 8, "row tile must be a multiple of 8 (sublane)"

    xf = x.reshape(T, H).astype(jnp.float32)

    # ---- gating: softmax + top-k (f32, XLA glue) ----
    scores = jax.nn.softmax(xf @ gate_w.astype(jnp.float32).T, axis=-1)       # (T, E)
    topk_w, topk_idx = jax.lax.top_k(scores, K)       # norm_topk_prob=False -> no renorm

    # ---- sort (token, k) pairs by expert; build tile-padded grouped layout ----
    TK = T * K
    flat_e = topk_idx.reshape(-1)                                             # (TK,)
    flat_w = topk_w.reshape(-1)                                               # (TK,)
    order = jnp.argsort(flat_e)
    e_sorted = flat_e[order]
    tok_sorted = (order // K).astype(jnp.int32)
    w_sorted = flat_w[order]

    counts = jnp.bincount(flat_e, length=E).astype(jnp.int32)                 # (E,)
    blocks_per_e = (counts + tt - 1) // tt
    zero = jnp.zeros((1,), jnp.int32)
    grp_start = jnp.concatenate([zero, jnp.cumsum(counts).astype(jnp.int32)])         # (E+1,)
    blk_start = jnp.concatenate([zero, jnp.cumsum(blocks_per_e).astype(jnp.int32)])   # (E+1,)

    nbr = TK // tt + E          # static bound: sum_e ceil(c_e/tt) <= TK//tt + E
    nbs = -(-T // tt)           # shared-expert blocks (handles T % tt != 0)
    nb = nbr + nbs
    rows = nb * tt

    # destination row of each sorted (token, k) pair inside the padded routed region
    pos = jnp.arange(TK, dtype=jnp.int32)
    dest = blk_start[e_sorted] * tt + (pos - grp_start[e_sorted])             # unique rows

    xb = xf.astype(jnp.bfloat16)
    x_all = jnp.zeros((rows, H), jnp.bfloat16).at[dest].set(xb[tok_sorted])
    w_all = jnp.zeros((rows, 1), jnp.float32).at[dest, 0].set(w_sorted)
    tok_all = jnp.full((rows,), T, jnp.int32).at[dest].set(tok_sorted)        # T = dummy sink

    # shared expert: identity token map, weight 1.0, expert slot E
    sh0 = nbr * tt
    x_all = x_all.at[sh0:sh0 + T].set(xb)
    w_all = w_all.at[sh0:sh0 + T, 0].set(1.0)
    tok_all = tok_all.at[sh0:sh0 + T].set(jnp.arange(T, dtype=jnp.int32))

    # per-block expert id (scalar-prefetched into SMEM). Unused padding blocks resolve to
    # slot E but carry all-zero rows with weight 0 and the dummy token -> contribute nothing.
    b_ids = jnp.arange(nb, dtype=jnp.int32)
    routed_e = jnp.searchsorted(blk_start, b_ids, side='right').astype(jnp.int32) - 1
    block_expert = jnp.where(b_ids < nbr, routed_e, jnp.int32(E)).astype(jnp.int32)

    # ---- grouped expert MLP + per-row weighting (Pallas hot path) ----
    out_rows = pl.pallas_call(
        moe_expert_kernel,
        out_shape=jax.ShapeDtypeStruct((rows, H), jnp.float32),
        grid_spec=pltpu.PrefetchScalarGridSpec(
            num_scalar_prefetch=1,
            grid=(nb,),
            in_specs=[
                pl.BlockSpec((tt, H), lambda b, be: (b, 0)),
                pl.BlockSpec((None, H, I), lambda b, be: (be[b], 0, 0)),
                pl.BlockSpec((None, H, I), lambda b, be: (be[b], 0, 0)),
                pl.BlockSpec((None, I, H), lambda b, be: (be[b], 0, 0)),
                pl.BlockSpec((tt, 1), lambda b, be: (b, 0)),
            ],
            out_specs=pl.BlockSpec((tt, H), lambda b, be: (b, 0)),
        ),
        compiler_params=pltpu.CompilerParams(
            dimension_semantics=("parallel",)),   # disjoint output tiles -> megacore-safe
    )(block_expert, x_all,
      wg.astype(jnp.bfloat16), wu.astype(jnp.bfloat16), wd.astype(jnp.bfloat16),
      w_all)

    # ---- scatter weighted rows back to tokens (row T is the dummy/padding sink) ----
    y = jnp.zeros((T + 1, H), jnp.float32).at[tok_all].add(out_rows)[:T]
    return y.reshape(B, S, H)
    # TODO(synk): at production DeepSeek sizes (H=576, I=1407/384) additionally tile the
    # intermediate dim I (extra "arbitrary" grid axis + f32 VMEM accumulator) and set
    # vmem_limit_bytes so bf16 weight tiles x double-buffering stay under scoped VMEM.


# ---------------- pure-JAX reference (correctness check) ----------------
def ref_moe(x, gate_w, wg, wu, wd, *, top_k=TOP_K):
    B, S, H = x.shape
    T = B * S
    E = gate_w.shape[0]
    xf = x.reshape(T, H)
    scores = jax.nn.softmax(xf @ gate_w.T, axis=-1)
    tw, ti = jax.lax.top_k(scores, top_k)

    def expert(e):
        g = xf @ wg[e]
        u = xf @ wu[e]
        return (g * jax.nn.sigmoid(g) * u) @ wd[e]

    all_out = jnp.stack([expert(e) for e in range(E)], axis=0)            # (E, T, H)
    wdense = jnp.sum(jax.nn.one_hot(ti, E) * tw[..., None], axis=1)       # (T, E)
    y = jnp.einsum('te,eth->th', wdense, all_out) + expert(E)             # + shared expert
    return y.reshape(B, S, H)


if __name__ == "__main__":
    assert N_SHARED == 1, "shared expert stacked with routed experts requires n_shared_experts=1"
    key = jax.random.PRNGKey(0)
    kx, kg, k1, k2, k3 = jax.random.split(key, 5)

    E1 = N_EXPERTS + 1  # routed experts + shared expert (slot E)
    x = jax.random.normal(kx, (BATCH, SEQ, HIDDEN), dtype=jnp.float32)
    gate_w = 0.05 * jax.random.normal(kg, (N_EXPERTS, HIDDEN), dtype=jnp.float32)
    wg = 0.02 * jax.random.normal(k1, (E1, HIDDEN, MOE_INTER), dtype=jnp.float32)
    wu = 0.02 * jax.random.normal(k2, (E1, HIDDEN, MOE_INTER), dtype=jnp.float32)
    wd = 0.02 * jax.random.normal(k3, (E1, MOE_INTER, HIDDEN), dtype=jnp.float32)

    moe = jax.jit(functools.partial(deepseek_moe, top_k=TOP_K, tt=TOKEN_TILE))
    y = jax.block_until_ready(moe(x, gate_w, wg, wu, wd))

    y_ref = jax.block_until_ready(ref_moe(x, gate_w, wg, wu, wd))
    # bf16 matmul inputs with f32 accumulation vs f32 reference -> modest tolerance.
    np.testing.assert_allclose(np.asarray(y), np.asarray(y_ref), rtol=2e-2, atol=3e-3)

    # TODO(synk): the aux (load-balancing) loss is a training-only scalar side output that
    # does not affect the forward value (AddAuxiliaryLoss is identity); not emitted here.
    print("KERNEL_OK")
</pallas_src>

<mosaic_0001>
module attributes {stable_mosaic.version = 11 : i64} {
  func.func @moe_expert_kernel(%arg0: i32, %arg1: memref<16xi32, #tpu.memory_space<smem>>, %arg2: memref<32x128xbf16, #tpu.memory_space<vmem>>, %arg3: memref<1x128x128xbf16, #tpu.memory_space<vmem>>, %arg4: memref<1x128x128xbf16, #tpu.memory_space<vmem>>, %arg5: memref<1x128x128xbf16, #tpu.memory_space<vmem>>, %arg6: memref<32x1xf32, #tpu.memory_space<vmem>>, %arg7: memref<32x128xf32, #tpu.memory_space<vmem>>) attributes {dimension_semantics = [#tpu.dimension_semantics<parallel>], iteration_bounds = array<i64: 16>, scalar_prefetch = 1 : i64, scratch_operands = 0 : i64, tpu.core_type = #tpu.core_type<tc>, window_params = [{transform_indices = @transform_0, window_bounds = array<i64: 32, 128>}, {transform_indices = @transform_1, window_bounds = array<i64: 1, 128, 128>}, {transform_indices = @transform_2, window_bounds = array<i64: 1, 128, 128>}, {transform_indices = @transform_3, window_bounds = array<i64: 1, 128, 128>}, {transform_indices = @transform_4, window_bounds = array<i64: 32, 1>}, {transform_indices = @transform_5, window_bounds = array<i64: 32, 128>}]} {
    %c0 = arith.constant 0 : index
    %c0_0 = arith.constant 0 : index
    %0 = vector.load %arg2[%c0, %c0_0] : memref<32x128xbf16, #tpu.memory_space<vmem>>, vector<32x128xbf16>
    %c0_1 = arith.constant 0 : index
    %c0_2 = arith.constant 0 : index
    %c0_3 = arith.constant 0 : index
    %1 = vector.load %arg3[%c0_1, %c0_2, %c0_3] : memref<1x128x128xbf16, #tpu.memory_space<vmem>>, vector<1x128x128xbf16>
    %2 = vector.shape_cast %1 : vector<1x128x128xbf16> to vector<128x128xbf16>
    %cst = arith.constant dense<0.000000e+00> : vector<32x128xf32>
    %3 = tpu.matmul %0, %2, %cst {dimension_numbers = #tpu.dot_dimension_numbers<[1], [0], [0], [1], [0, 0, 1, 1], [], []>} : vector<32x128xbf16>, vector<128x128xbf16>, vector<32x128xf32> -> vector<32x128xf32>
    %c0_4 = arith.constant 0 : index
    %c0_5 = arith.constant 0 : index
    %c0_6 = arith.constant 0 : index
    %4 = vector.load %arg4[%c0_4, %c0_5, %c0_6] : memref<1x128x128xbf16, #tpu.memory_space<vmem>>, vector<1x128x128xbf16>
    %5 = vector.shape_cast %4 : vector<1x128x128xbf16> to vector<128x128xbf16>
    %cst_7 = arith.constant dense<0.000000e+00> : vector<32x128xf32>
    %6 = tpu.matmul %0, %5, %cst_7 {dimension_numbers = #tpu.dot_dimension_numbers<[1], [0], [0], [1], [0, 0, 1, 1], [], []>} : vector<32x128xbf16>, vector<128x128xbf16>, vector<32x128xf32> -> vector<32x128xf32>
    %7 = arith.negf %3 : vector<32x128xf32>
    %8 = math.exp %7 : vector<32x128xf32>
    %cst_8 = arith.constant 1.000000e+00 : f32
    %9 = vector.broadcast %cst_8 : f32 to vector<32x128xf32>
    %10 = arith.addf %9, %8 : vector<32x128xf32>
    %11 = arith.divf %9, %10 : vector<32x128xf32>
    %12 = arith.mulf %3, %11 : vector<32x128xf32>
    %13 = arith.mulf %12, %6 : vector<32x128xf32>
    %14 = arith.truncf %13 : vector<32x128xf32> to vector<32x128xbf16>
    %c0_9 = arith.constant 0 : index
    %c0_10 = arith.constant 0 : index
    %c0_11 = arith.constant 0 : index
    %15 = vector.load %arg5[%c0_9, %c0_10, %c0_11] : memref<1x128x128xbf16, #tpu.memory_space<vmem>>, vector<1x128x128xbf16>
    %16 = vector.shape_cast %15 : vector<1x128x128xbf16> to vector<128x128xbf16>
    %cst_12 = arith.constant dense<0.000000e+00> : vector<32x128xf32>
    %17 = tpu.matmul %14, %16, %cst_12 {dimension_numbers = #tpu.dot_dimension_numbers<[1], [0], [0], [1], [0, 0, 1, 1], [], []>} : vector<32x128xbf16>, vector<128x128xbf16>, vector<32x128xf32> -> vector<32x128xf32>
    %c0_13 = arith.constant 0 : index
    %c0_14 = arith.constant 0 : index
    %18 = vector.load %arg6[%c0_13, %c0_14] : memref<32x1xf32, #tpu.memory_space<vmem>>, vector<32x1xf32>
    %19 = vector.broadcast %18 : vector<32x1xf32> to vector<32x128xf32>
    %20 = arith.mulf %19, %17 : vector<32x128xf32>
    %c0_15 = arith.constant 0 : index
    %c0_16 = arith.constant 0 : index
    %21 = vector.load %arg7[%c0_15, %c0_16] : memref<32x128xf32, #tpu.memory_space<vmem>>, vector<32x128xf32>
    tpu.vector_store %arg7[%c0_15, %c0_16], %20 {strides = array<i32>} : memref<32x128xf32, #tpu.memory_space<vmem>>, vector<32x128xf32>,
    return
  }
  func.func @transform_0(%arg0: i32, %arg1: memref<16xi32, #tpu.memory_space<smem>>) -> (i32, i32) {
    %c0_i32 = arith.constant 0 : i32
    %c0_i32_0 = arith.constant 0 : i32
    return %arg0, %c0_i32 : i32, i32
  }
  func.func @transform_1(%arg0: i32, %arg1: memref<16xi32, #tpu.memory_space<smem>>) -> (i32, i32, i32) {
    %0 = arith.index_cast %arg0 : i32 to index
    %1 = memref.load %arg1[%0] : memref<16xi32, #tpu.memory_space<smem>>
    %c0_i32 = arith.constant 0 : i32
    %c0_i32_0 = arith.constant 0 : i32
    %c0_i32_1 = arith.constant 0 : i32
    return %1, %c0_i32, %c0_i32_0 : i32, i32, i32
  }
  func.func @transform_2(%arg0: i32, %arg1: memref<16xi32, #tpu.memory_space<smem>>) -> (i32, i32, i32) {
    %0 = arith.index_cast %arg0 : i32 to index
    %1 = memref.load %arg1[%0] : memref<16xi32, #tpu.memory_space<smem>>
    %c0_i32 = arith.constant 0 : i32
    %c0_i32_0 = arith.constant 0 : i32
    %c0_i32_1 = arith.constant 0 : i32
    return %1, %c0_i32, %c0_i32_0 : i32, i32, i32
  }
  func.func @transform_3(%arg0: i32, %arg1: memref<16xi32, #tpu.memory_space<smem>>) -> (i32, i32, i32) {
    %0 = arith.index_cast %arg0 : i32 to index
    %1 = memref.load %arg1[%0] : memref<16xi32, #tpu.memory_space<smem>>
    %c0_i32 = arith.constant 0 : i32
    %c0_i32_0 = arith.constant 0 : i32
    %c0_i32_1 = arith.constant 0 : i32
    return %1, %c0_i32, %c0_i32_0 : i32, i32, i32
  }
  func.func @transform_4(%arg0: i32, %arg1: memref<16xi32, #tpu.memory_space<smem>>) -> (i32, i32) {
    %c0_i32 = arith.constant 0 : i32
    %c0_i32_0 = arith.constant 0 : i32
    return %arg0, %c0_i32 : i32, i32
  }
  func.func @transform_5(%arg0: i32, %arg1: memref<16xi32, #tpu.memory_space<smem>>) -> (i32, i32) {
    %c0_i32 = arith.constant 0 : i32
    %c0_i32_0 = arith.constant 0 : i32
    return %arg0, %c0_i32 : i32, i32
  }
}

</mosaic_0001>

<llo_original>
// kernel: custom-call.1
$region0: #{custom-call.1}
  %s0 = inlined_call_operand.vmem [shape: u32[16], index: 0, kind: output, shape index: {}]

// kernel: deepseek_moe.1
$region0: #{deepseek_moe.1}
  #allocation0 [shape = 'u32[]', space=smem, size = 0x4, offset = 0x4, fixed_abs, tag = 'smem constant byte address 0x4 - core index']
  #allocation1 [shape = 'u32[72,128]{1,0:T(1,128)}', space=vmem, size = 0x9000, scoped, tag = 'internal scratch']
  #allocation2 [shape = 's32[1]{0}', space=sflag, size = 0x4, scoped, tag = 'scoped memory for deepseek_moe.1']
  #allocation3 [shape = 'u8[512]{0}', space=smem, size = 0x200, scoped, tag = 'prefetched SMEM operand 0']
  %s0 = inlined_call_operand.vmem [shape: s32[16], index: 0, kind: input, shape index: {}]
  %s1 = inlined_call_operand.vmem [shape: bf16[512,128], index: 1, kind: input, shape index: {}]
  %s2 = inlined_call_operand.vmem [shape: bf16[9,128,128], index: 2, kind: input, shape index: {}]
  %s3 = inlined_call_operand.vmem [shape: bf16[9,128,128], index: 3, kind: input, shape index: {}]
  %s4 = inlined_call_operand.vmem [shape: bf16[9,128,128], index: 4, kind: input, shape index: {}]
  %s5 = inlined_call_operand.vmem [shape: f32[512,1], index: 5, kind: input, shape index: {}]
  %s6 = inlined_call_operand.vmem [shape: f32[512,128], index: 6, kind: output, shape index: {}]
  %s7 = sld [smem:[#allocation0]]
  $region53: #{deepseek_moe.1} parent=0
    _
  %s9 = ssub.s32 1, %s7
  %s10 = scalar_select 0, %s9, %s7
  %s12 = sshll.u32 %s0, 4
  %s13 = int_to_ptr.vmem [resolvable:$true] %s12
  %15 = dma.vmem_to_smem %s13, 16, [#allocation3], [#allocation2]
  %17 = dma.done [#allocation2], 16
  %18 = sfence
  loop: start=0, step=1, limit=18
  $region2: #{deepseek_moe.1} parent=0 // loop_pre_header
    _
  $region3: #{deepseek_moe.1} parent=0 // loop_header
    %s20 = sphi 0, %s24
    %p21 = scmp.ge.s32.totalorder %s20, 18
    %s30 = sphi 0, %s32
    %s33 = sphi 0, %s30
    %s34 = sphi 0, %s33
    %s50 = sphi 0, %s34
    %s58 = sphi 0, %s60
    %s61 = sphi 0, %s58
    %s62 = sphi 0, %s61
    %s78 = sphi 0, %s62
    %s86 = sphi 0, %s88
    %s89 = sphi 0, %s86
    %s90 = sphi 0, %s89
    %s106 = sphi 0, %s90
    %s114 = sphi 0, %s116
    %s117 = sphi 0, %s114
    %s118 = sphi 0, %s117
    %s134 = sphi 0, %s118
    %s140 = sphi 0, %s142
    %s143 = sphi 0, %s140
    %s144 = sphi 0, %s143
    %s160 = sphi 0, %s144
    %s166 = sphi 0, %s168
    %s169 = sphi 0, %s166
    %s170 = sphi 0, %s169
    %s186 = sphi 0, %s170
  $region4: #{deepseek_moe.1} parent=0 // loop_header_branch
    %23 = sbr.rel (%p21) target = $region8
  $region5: #{deepseek_moe.1} parent=0 // loop_body
    %s25 = ssub.s32 %s20, 1
    %s26 = ssub.s32 %s20, 2
    %s27 = sadd.s32 %s20, 1
    %s28 = ssub.s32 %s20, %s27
    %p29 = scmp.eq.s32.totalorder %s28, 0
    %s31 = sadd.s32 %s30, 1
    %s32 = scalar_select %p29, %s30, %s31
    %p35 = pneg %p29
    %p36 = scmp.eq.s32.totalorder %s20, 15
    %p37 = por %p35, %p36
    %p38 = scmp.ne.s32.totalorder %s30, %s33
    %p39 = scmp.eq.s32.totalorder %s20, 0
    %p40 = por %p38, %p39
    %p41 = scmp.ne.s32.totalorder %s30, %s33
    %p42 = scmp.eq.s32.totalorder %s25, 15
    %p43 = por %p41, %p42
    %p44 = scmp.ne.s32.totalorder %s33, %s34
    %p45 = scmp.eq.s32.totalorder %s25, 0
    %p46 = por %p44, %p45
    %p47 = scmp.ne.s32.totalorder %s33, %s34
    %p48 = scmp.eq.s32.totalorder %s26, 15
    %p49 = por %p47, %p48
    %p51 = scmp.ne.s32.totalorder %s34, %s50
    %p52 = scmp.eq.s32.totalorder %s26, 0
    %p53 = por %p51, %p52
    %s54 = sld [smem:[#allocation3 + %s20]]
    %s55 = sld [smem:[#allocation3 + %s27]]
    %s56 = ssub.s32 %s54, %s55
    %p57 = scmp.eq.s32.totalorder %s56, 0
    %s59 = sadd.s32 %s58, 1
    %s60 = scalar_select %p57, %s58, %s59
    %p63 = pneg %p57
    %p64 = scmp.eq.s32.totalorder %s20, 15
    %p65 = por %p63, %p64
    %p66 = scmp.ne.s32.totalorder %s58, %s61
    %p67 = scmp.eq.s32.totalorder %s20, 0
    %p68 = por %p66, %p67
    %p69 = scmp.ne.s32.totalorder %s58, %s61
    %p70 = scmp.eq.s32.totalorder %s25, 15
    %p71 = por %p69, %p70
    %p72 = scmp.ne.s32.totalorder %s61, %s62
    %p73 = scmp.eq.s32.totalorder %s25, 0
    %p74 = por %p72, %p73
    %p75 = scmp.ne.s32.totalorder %s61, %s62
    %p76 = scmp.eq.s32.totalorder %s26, 15
    %p77 = por %p75, %p76
    %p79 = scmp.ne.s32.totalorder %s62, %s78
    %p80 = scmp.eq.s32.totalorder %s26, 0
    %p81 = por %p79, %p80
    %s82 = sld [smem:[#allocation3 + %s20]]
    %s83 = sld [smem:[#allocation3 + %s27]]
    %s84 = ssub.s32 %s82, %s83
    %p85 = scmp.eq.s32.totalorder %s84, 0
    %s87 = sadd.s32 %s86, 1
    %s88 = scalar_select %p85, %s86, %s87
    %p91 = pneg %p85
    %p92 = scmp.eq.s32.totalorder %s20, 15
    %p93 = por %p91, %p92
    %p94 = scmp.ne.s32.totalorder %s86, %s89
    %p95 = scmp.eq.s32.totalorder %s20, 0
    %p96 = por %p94, %p95
    %p97 = scmp.ne.s32.totalorder %s86, %s89
    %p98 = scmp.eq.s32.totalorder %s25, 15
    %p99 = por %p97, %p98
    %p100 = scmp.ne.s32.totalorder %s89, %s90
    %p101 = scmp.eq.s32.totalorder %s25, 0
    %p102 = por %p100, %p101
    %p103 = scmp.ne.s32.totalorder %s89, %s90
    %p104 = scmp.eq.s32.totalorder %s26, 15
    %p105 = por %p103, %p104
    %p107 = scmp.ne.s32.totalorder %s90, %s106
    %p108 = scmp.eq.s32.totalorder %s26, 0
    %p109 = por %p107, %p108
    %s110 = sld [smem:[#allocation3 + %s20]]
    %s111 = sld [smem:[#allocation3 + %s27]]
    %s112 = ssub.s32 %s110, %s111
    %p113 = scmp.eq.s32.totalorder %s112, 0
    %s115 = sadd.s32 %s114, 1
    %s116 = scalar_select %p113, %s114, %s115
    %p119 = pneg %p113
    %p120 = scmp.eq.s32.totalorder %s20, 15
    %p121 = por %p119, %p120
    %p122 = scmp.ne.s32.totalorder %s114, %s117
    %p123 = scmp.eq.s32.totalorder %s20, 0
    %p124 = por %p122, %p123
    %p125 = scmp.ne.s32.totalorder %s114, %s117
    %p126 = scmp.eq.s32.totalorder %s25, 15
    %p127 = por %p125, %p126
    %p128 = scmp.ne.s32.totalorder %s117, %s118
    %p129 = scmp.eq.s32.totalorder %s25, 0
    %p130 = por %p128, %p129
    %p131 = scmp.ne.s32.totalorder %s117, %s118
    %p132 = scmp.eq.s32.totalorder %s26, 15
    %p133 = por %p131, %p132
    %p135 = scmp.ne.s32.totalorder %s118, %s134
    %p136 = scmp.eq.s32.totalorder %s26, 0
    %p137 = por %p135, %p136
    %s138 = ssub.s32 %s20, %s27
    %p139 = scmp.eq.s32.totalorder %s138, 0
    %s141 = sadd.s32 %s140, 1
    %s142 = scalar_select %p139, %s140, %s141
    %p145 = pneg %p139
    %p146 = scmp.eq.s32.totalorder %s20, 15
    %p147 = por %p145, %p146
    %p148 = scmp.ne.s32.totalorder %s140, %s143
    %p149 = scmp.eq.s32.totalorder %s20, 0
    %p150 = por %p148, %p149
    %p151 = scmp.ne.s32.totalorder %s140, %s143
    %p152 = scmp.eq.s32.totalorder %s25, 15
    %p153 = por %p151, %p152
    %p154 = scmp.ne.s32.totalorder %s143, %s144
    %p155 = scmp.eq.s32.totalorder %s25, 0
    %p156 = por %p154, %p155
    %p157 = scmp.ne.s32.totalorder %s143, %s144
    %p158 = scmp.eq.s32.totalorder %s26, 15
    %p159 = por %p157, %p158
    %p161 = scmp.ne.s32.totalorder %s144, %s160
    %p162 = scmp.eq.s32.totalorder %s26, 0
    %p163 = por %p161, %p162
    %s164 = ssub.s32 %s20, %s27
    %p165 = scmp.eq.s32.totalorder %s164, 0
    %s167 = sadd.s32 %s166, 1
    %s168 = scalar_select %p165, %s166, %s167
    %p171 = pneg %p165
    %p172 = scmp.eq.s32.totalorder %s20, 15
    %p173 = por %p171, %p172
    %p174 = scmp.ne.s32.totalorder %s166, %s169
    %p175 = scmp.eq.s32.totalorder %s20, 0
    %p176 = por %p174, %p175
    %p177 = scmp.ne.s32.totalorder %s166, %s169
    %p178 = scmp.eq.s32.totalorder %s25, 15
    %p179 = por %p177, %p178
    %p180 = scmp.ne.s32.totalorder %s169, %s170
    %p181 = scmp.eq.s32.totalorder %s25, 0
    %p182 = por %p180, %p181
    %p183 = scmp.ne.s32.totalorder %s169, %s170
    %p184 = scmp.eq.s32.totalorder %s26, 15
    %p185 = por %p183, %p184
    %p187 = scmp.ne.s32.totalorder %s170, %s186
    %p188 = scmp.eq.s32.totalorder %s26, 0
    %p189 = por %p187, %p188
    %p190 = scmp.le.s32.totalorder 1, %s20
    %p191 = scmp.lt.s32.totalorder %s20, 17
    %p192 = pnand %p190, %p191
    %p193 = pneg %p192
    // Predicated region
    $region9: #{deepseek_moe.1} parent=5 // pred_check
      _
    $region10: #{deepseek_moe.1} parent=5 // pred_check_branch
      %195 = sbr.rel (%p192) target = $region12
    $region11: #{deepseek_moe.1} parent=5 // pred_region
      %s196 = ssub.s32 %s20, 1
    $region12: #{deepseek_moe.1} parent=5 // pred_fallthru
      _
    %p197 = scmp.lt.s32.totalorder %s20, 16
    // Predicated region
    $region13: #{deepseek_moe.1} parent=5 // pred_check
      %p198 = pneg %p197
    $region14: #{deepseek_moe.1} parent=5 // pred_check_branch
      %200 = sbr.rel (%p198) target = $region16
    $region15: #{deepseek_moe.1} parent=5 // pred_region
      // Predicated region
      $region17: #{deepseek_moe.1} parent=15 // pred_check
        %p201 = pneg %p40
      $region18: #{deepseek_moe.1} parent=15 // pred_check_branch
        %203 = sbr.rel (%p201) target = $region20
      $region19: #{deepseek_moe.1} parent=15 // pred_region
        %s204 = smul.u32 4, %s20
        %p205 = scmp.lt.s32.totalorder %s204, 63
        %s206 = scalar_select %p205, %s204, 63
        %s207 = smul.addr %s206, 4
        %s208 = scalar_lea.vmem %s1, %s207
        %s209 = smul.u32 4, %s20
      $region20: #{deepseek_moe.1} parent=15 // pred_fallthru
        _
      // Predicated region
      $region21: #{deepseek_moe.1} parent=15 // pred_check
        %p210 = pneg %p68
      $region22: #{deepseek_moe.1} parent=15 // pred_check_branch
        %212 = sbr.rel (%p210) target = $region24
      $region23: #{deepseek_moe.1} parent=15 // pred_region
        %s213 = sld [smem:[#allocation3 + %s20]]
        %p214 = scmp.lt.s32.totalorder %s213, 8
        %s215 = scalar_select %p214, %s213, 8
        %s216 = smul.addr %s215, 16
        %s217 = smul.addr %s216, 4
        %s218 = scalar_lea.vmem %s2, %s217
        %s219 = sld [smem:[#allocation3 + %s20]]
      $region24: #{deepseek_moe.1} parent=15 // pred_fallthru
        _
      // Predicated region
      $region25: #{deepseek_moe.1} parent=15 // pred_check
        %p220 = pneg %p96
      $region26: #{deepseek_moe.1} parent=15 // pred_check_branch
        %222 = sbr.rel (%p220) target = $region28
      $region27: #{deepseek_moe.1} parent=15 // pred_region
        %s223 = sld [smem:[#allocation3 + %s20]]
        %p224 = scmp.lt.s32.totalorder %s223, 8
        %s225 = scalar_select %p224, %s223, 8
        %s226 = smul.addr %s225, 16
        %s227 = smul.addr %s226, 4
        %s228 = scalar_lea.vmem %s3, %s227
        %s229 = sld [smem:[#allocation3 + %s20]]
      $region28: #{deepseek_moe.1} parent=15 // pred_fallthru
        _
      // Predicated region
      $region29: #{deepseek_moe.1} parent=15 // pred_check
        %p230 = pneg %p124
      $region30: #{deepseek_moe.1} parent=15 // pred_check_branch
        %232 = sbr.rel (%p230) target = $region32
      $region31: #{deepseek_moe.1} parent=15 // pred_region
        %s233 = sld [smem:[#allocation3 + %s20]]
        %p234 = scmp.lt.s32.totalorder %s233, 8
        %s235 = scalar_select %p234, %s233, 8
        %s236 = smul.addr %s235, 16
        %s237 = smul.addr %s236, 4
        %s238 = scalar_lea.vmem %s4, %s237
        %s239 = sld [smem:[#allocation3 + %s20]]
      $region32: #{deepseek_moe.1} parent=15 // pred_fallthru
        _
      // Predicated region
      $region33: #{deepseek_moe.1} parent=15 // pred_check
        %p240 = pneg %p150
      $region34: #{deepseek_moe.1} parent=15 // pred_check_branch
        %242 = sbr.rel (%p240) target = $region36
      $region35: #{deepseek_moe.1} parent=15 // pred_region
        %s243 = smul.u32 4, %s20
        %p244 = scmp.lt.s32.totalorder %s243, 63
        %s245 = scalar_select %p244, %s243, 63
        %s246 = smul.addr %s245, 8
        %s247 = scalar_lea.vmem %s5, %s246
        %s248 = smul.u32 4, %s20
      $region36: #{deepseek_moe.1} parent=15 // pred_fallthru
        _
    $region16: #{deepseek_moe.1} parent=5 // pred_fallthru
      _
    %p249 = scmp.le.s32.totalorder 1, %s20
    %p250 = scmp.lt.s32.totalorder %s20, 17
    %p251 = pnand %p249, %p250
    %p252 = pneg %p251
    // Predicated region
    $region37: #{deepseek_moe.1} parent=5 // pred_check
      _
    $region38: #{deepseek_moe.1} parent=5 // pred_check_branch
      %254 = sbr.rel (%p251) target = $region40
    $region39: #{deepseek_moe.1} parent=5 // pred_region
      %s255 = ssub.s32 %s20, 1
      %s256 = smul.u32 4, %s25
      %p257 = scmp.lt.s32.totalorder %s256, 63
      %s258 = scalar_select %p257, %s256, 63
      %s259 = smul.addr %s258, 4
      %s260 = scalar_lea.vmem %s1, %s259
      %p261 = pneg %p46
      %p262 = pneg %p43
      %s263 = sld [smem:[#allocation3 + %s25]]
      %p264 = scmp.lt.s32.totalorder %s263, 8
      %s265 = scalar_select %p264, %s263, 8
      %s266 = smul.addr %s265, 16
      %s267 = smul.addr %s266, 4
      %s268 = scalar_lea.vmem %s2, %s267
      %p269 = pneg %p74
      %p270 = pneg %p71
      %s271 = sld [smem:[#allocation3 + %s25]]
      %p272 = scmp.lt.s32.totalorder %s271, 8
      %s273 = scalar_select %p272, %s271, 8
      %s274 = smul.addr %s273, 16
      %s275 = smul.addr %s274, 4
      %s276 = scalar_lea.vmem %s3, %s275
      %p277 = pneg %p102
      %p278 = pneg %p99
      %s279 = sld [smem:[#allocation3 + %s25]]
      %p280 = scmp.lt.s32.totalorder %s279, 8
      %s281 = scalar_select %p280, %s279, 8
      %s282 = smul.addr %s281, 16
      %s283 = smul.addr %s282, 4
      %s284 = scalar_lea.vmem %s4, %s283
      %p285 = pneg %p130
      %p286 = pneg %p127
      %s287 = smul.u32 4, %s25
      %p288 = scmp.lt.s32.totalorder %s287, 63
      %s289 = scalar_select %p288, %s287, 63
      %s290 = smul.addr %s289, 8
      %s291 = scalar_lea.vmem %s5, %s290
      %p292 = pneg %p156
      %p293 = pneg %p153
      %p294 = pneg %p182
      %p295 = pneg %p179
      %s296 = smul.u32 4, %s25
      %p297 = scmp.lt.s32.totalorder %s296, 63
      %s298 = scalar_select %p297, %s296, 63
      %s299 = smul.addr %s298, 8
      %s300 = scalar_lea.vmem %s6, %s299
      %s301 = smul.u32 4, %s25
      %p302 = scmp.lt.s32.totalorder %s301, 63
      %s303 = scalar_select %p302, %s301, 63
      %s304 = smul.addr %s303, 4
      %s305 = scalar_lea.vmem %s1, %s304
      %s306 = smul.u32 4, %s25
      %s307 = sld [smem:[#allocation3 + %s25]]
      %p308 = scmp.lt.s32.totalorder %s307, 8
      %s309 = scalar_select %p308, %s307, 8
      %s310 = smul.addr %s309, 16
      %s311 = smul.addr %s310, 4
      %s312 = scalar_lea.vmem %s2, %s311
      %s313 = sld [smem:[#allocation3 + %s25]]
      %s314 = sld [smem:[#allocation3 + %s25]]
      %p315 = scmp.lt.s32.totalorder %s314, 8
      %s316 = scalar_select %p315, %s314, 8
      %s317 = smul.addr %s316, 16
      %s318 = smul.addr %s317, 4
      %s319 = scalar_lea.vmem %s3, %s318
      %s320 = sld [smem:[#allocation3 + %s25]]
      %s321 = sld [smem:[#allocation3 + %s25]]
      %p322 = scmp.lt.s32.totalorder %s321, 8
      %s323 = scalar_select %p322, %s321, 8
      %s324 = smul.addr %s323, 16
      %s325 = smul.addr %s324, 4
      %s326 = scalar_lea.vmem %s4, %s325
      %s327 = sld [smem:[#allocation3 + %s25]]
      %s328 = smul.u32 4, %s25
      %p329 = scmp.lt.s32.totalorder %s328, 63
      %s330 = scalar_select %p329, %s328, 63
      %s331 = smul.addr %s330, 8
      %s332 = scalar_lea.vmem %s5, %s331
      %s333 = smul.u32 4, %s25
      %s334 = smul.u32 4, %s25
      %p335 = scmp.lt.s32.totalorder %s334, 63
      %s336 = scalar_select %p335, %s334, 63
      %s337 = smul.addr %s336, 8
      %s338 = scalar_lea.vmem %s6, %s337
      %s339 = smul.u32 4, %s25
      %v340 = vld [vmem:[%s305] sm:$0xf]
      %v341 = vld [vmem:[%s305 + $0x4] sm:$0xf]
      %v342 = vld [vmem:[%s305 + $0x8] sm:$0xf]
      %v343 = vld [vmem:[%s305 + $0xc] sm:$0xf]
      %v344 = vld [vmem:[%s312] sm:$0xf]
      %v345 = vld [vmem:[%s312 + $0x4] sm:$0xf]
      %v346 = vld [vmem:[%s312 + $0x8] sm:$0xf]
      %v347 = vld [vmem:[%s312 + $0xc] sm:$0xf]
      %v348 = vld [vmem:[%s312 + $0x10] sm:$0xf]
      %v349 = vld [vmem:[%s312 + $0x14] sm:$0xf]
      %v350 = vld [vmem:[%s312 + $0x18] sm:$0xf]
      %v351 = vld [vmem:[%s312 + $0x1c] sm:$0xf]
      %v352 = vld [vmem:[%s312 + $0x20] sm:$0xf]
      %v353 = vld [vmem:[%s312 + $0x24] sm:$0xf]
      %v354 = vld [vmem:[%s312 + $0x28] sm:$0xf]
      %v355 = vld [vmem:[%s312 + $0x2c] sm:$0xf]
      %v356 = vld [vmem:[%s312 + $0x30] sm:$0xf]
      %v357 = vld [vmem:[%s312 + $0x34] sm:$0xf]
      %v358 = vld [vmem:[%s312 + $0x38] sm:$0xf]
      %v359 = vld [vmem:[%s312 + $0x3c] sm:$0xf]
      %v364 = vunpack.c.l.b16 %v340
      %v365 = vunpack.c.l.b16 %v341
      %v366 = vunpack.c.l.b16 %v342
      %v367 = vunpack.c.l.b16 %v343
      %v368 = vpack.c.b16 %v365, %v364
      %v369 = vpack.c.b16 %v367, %v366
      %v388 = vunpack.c.l.b16 %v344
      %v389 = vunpack.c.l.b16 %v345
      %v390 = vunpack.c.l.b16 %v346
      %v391 = vunpack.c.l.b16 %v347
      %v392 = vunpack.c.l.b16 %v348
      %v393 = vunpack.c.l.b16 %v349
      %v394 = vunpack.c.l.b16 %v350
      %v395 = vunpack.c.l.b16 %v351
      %v396 = vunpack.c.l.b16 %v352
      %v397 = vunpack.c.l.b16 %v353
      %v398 = vunpack.c.l.b16 %v354
      %v399 = vunpack.c.l.b16 %v355
      %v400 = vunpack.c.l.b16 %v356
      %v401 = vunpack.c.l.b16 %v357
      %v402 = vunpack.c.l.b16 %v358
      %v403 = vunpack.c.l.b16 %v359
      %v404 = vpack.c.b16 %v389, %v388
      %v405 = vpack.c.b16 %v391, %v390
      %v406 = vpack.c.b16 %v393, %v392
      %v407 = vpack.c.b16 %v395, %v394
      %v408 = vpack.c.b16 %v397, %v396
      %v409 = vpack.c.b16 %v399, %v398
      %v410 = vpack.c.b16 %v401, %v400
      %v411 = vpack.c.b16 %v403, %v402
      %420 = vmatpush.bf16.msra.mxu0 %v411
      %421 = vmatpush.bf16.msra.mxu0 %v410
      %422 = vmatpush.bf16.msra.mxu0 %v409
      %423 = vmatpush.bf16.msra.mxu0 %v408
      %424 = vmatpush.bf16.msra.mxu0 %v407
      %425 = vmatpush.bf16.msra.mxu0 %v406
      %426 = vmatpush.bf16.msra.mxu0 %v405
      %427 = vmatpush.bf16.msra.mxu0 %v404
      %428 = vmatmul.bf16.gmra.mxu0 %v368
      %v429 = vpop.f32.mrf.mxu0
      %v430 = vadd.f32 0.0, %v429
      %v431 = vpop.f32.mrf.mxu0
      %v432 = vadd.f32 0.0, %v431
      %433 = vmatmul.bf16.gmra.mxu0 %v369
      %v434 = vpop.f32.mrf.mxu0
      %v435 = vadd.f32 0.0, %v434
      %v436 = vpop.f32.mrf.mxu0
      %v437 = vadd.f32 0.0, %v436
      %438 = vdwg.mxu0
      %v439 = vld [vmem:[%s319] sm:$0xf]
      %v440 = vld [vmem:[%s319 + $0x4] sm:$0xf]
      %v441 = vld [vmem:[%s319 + $0x8] sm:$0xf]
      %v442 = vld [vmem:[%s319 + $0xc] sm:$0xf]
      %v443 = vld [vmem:[%s319 + $0x10] sm:$0xf]
      %v444 = vld [vmem:[%s319 + $0x14] sm:$0xf]
      %v445 = vld [vmem:[%s319 + $0x18] sm:$0xf]
      %v446 = vld [vmem:[%s319 + $0x1c] sm:$0xf]
      %v447 = vld [vmem:[%s319 + $0x20] sm:$0xf]
      %v448 = vld [vmem:[%s319 + $0x24] sm:$0xf]
      %v449 = vld [vmem:[%s319 + $0x28] sm:$0xf]
      %v450 = vld [vmem:[%s319 + $0x2c] sm:$0xf]
      %v451 = vld [vmem:[%s319 + $0x30] sm:$0xf]
      %v452 = vld [vmem:[%s319 + $0x34] sm:$0xf]
      %v453 = vld [vmem:[%s319 + $0x38] sm:$0xf]
      %v454 = vld [vmem:[%s319 + $0x3c] sm:$0xf]
      %v471 = vunpack.c.l.b16 %v439
      %v472 = vunpack.c.l.b16 %v440
      %v473 = vunpack.c.l.b16 %v441
      %v474 = vunpack.c.l.b16 %v442
      %v475 = vunpack.c.l.b16 %v443
      %v476 = vunpack.c.l.b16 %v444
      %v477 = vunpack.c.l.b16 %v445
      %v478 = vunpack.c.l.b16 %v446
      %v479 = vunpack.c.l.b16 %v447
      %v480 = vunpack.c.l.b16 %v448
      %v481 = vunpack.c.l.b16 %v449
      %v482 = vunpack.c.l.b16 %v450
      %v483 = vunpack.c.l.b16 %v451
      %v484 = vunpack.c.l.b16 %v452
      %v485 = vunpack.c.l.b16 %v453
      %v486 = vunpack.c.l.b16 %v454
      %v487 = vpack.c.b16 %v472, %v471
      %v488 = vpack.c.b16 %v474, %v473
      %v489 = vpack.c.b16 %v476, %v475
      %v490 = vpack.c.b16 %v478, %v477
      %v491 = vpack.c.b16 %v480, %v479
      %v492 = vpack.c.b16 %v482, %v481
      %v493 = vpack.c.b16 %v484, %v483
      %v494 = vpack.c.b16 %v486, %v485
      %503 = vmatpush.bf16.msra.mxu0 %v494
      %504 = vmatpush.bf16.msra.mxu0 %v493
      %505 = vmatpush.bf16.msra.mxu0 %v492
      %506 = vmatpush.bf16.msra.mxu0 %v491
      %507 = vmatpush.bf16.msra.mxu0 %v490
      %508 = vmatpush.bf16.msra.mxu0 %v489
      %509 = vmatpush.bf16.msra.mxu0 %v488
      %510 = vmatpush.bf16.msra.mxu0 %v487
      %511 = vmatmul.bf16.gmra.mxu0 %v368
      %v512 = vpop.f32.mrf.mxu0
      %v513 = vadd.f32 0.0, %v512
      %v514 = vpop.f32.mrf.mxu0
      %v515 = vadd.f32 0.0, %v514
      %516 = vmatmul.bf16.gmra.mxu0 %v369
      %v517 = vpop.f32.mrf.mxu0
      %v518 = vadd.f32 0.0, %v517
      %v519 = vpop.f32.mrf.mxu0
      %v520 = vadd.f32 0.0, %v519
      %521 = vdwg.mxu0
      %v522 = vxor.u32 %v430, 2147483648
      %v523 = vxor.u32 %v432, 2147483648
      %v524 = vxor.u32 %v435, 2147483648
      %v525 = vxor.u32 %v437, 2147483648
      %v526 = vmul.f32 %v522, 1.442695
      %v527 = vpow.pop %v526
      %v528 = vmul.f32 %v523, 1.442695
      %v529 = vpow.pop %v528
      %v530 = vmul.f32 %v524, 1.442695
      %v531 = vpow.pop %v530
      %v532 = vmul.f32 %v525, 1.442695
      %v533 = vpow.pop %v532
      %v534 = vadd.f32 %v527, 1.0
      %v535 = vadd.f32 %v529, 1.0
      %v536 = vadd.f32 %v531, 1.0
      %v537 = vadd.f32 %v533, 1.0
      %v538 = vrcp.pop %v534
      %v539 = vmul.f32 %v534, %v538
      %v540 = vsub.f32 1.0, %v539
      %v541 = vmul.f32 %v538, %v540
      %v542 = vadd.f32 %v538, %v541
      %vm543 = vweird.f32 %v534
      %vm544 = vweird.f32 %v538
      %vm545 = vmor %vm543, %vm544
      %v546 = vsel %vm545, %v538, %v542
      %v547 = vand.u32 2147483647, %v534
      %vm548 = vcmp.eq.f32.partialorder %v547, 8.507059e+37
      %v549 = vand.u32 %v534, 2147483648
      %v550 = vor.u32 1.1754944e-38, %v549
      %v551 = vsel %vm548, %v550, %v546
      %v552 = vmul.f32 1.0, %v551
      %v553 = vrcp.pop %v535
      %v554 = vmul.f32 %v535, %v553
      %v555 = vsub.f32 1.0, %v554
      %v556 = vmul.f32 %v553, %v555
      %v557 = vadd.f32 %v553, %v556
      %vm558 = vweird.f32 %v535
      %vm559 = vweird.f32 %v553
      %vm560 = vmor %vm558, %vm559
      %v561 = vsel %vm560, %v553, %v557
      %v562 = vand.u32 2147483647, %v535
      %vm563 = vcmp.eq.f32.partialorder %v562, 8.507059e+37
      %v564 = vand.u32 %v535, 2147483648
      %v565 = vor.u32 1.1754944e-38, %v564
      %v566 = vsel %vm563, %v565, %v561
      %v567 = vmul.f32 1.0, %v566
      %v568 = vrcp.pop %v536
      %v569 = vmul.f32 %v536, %v568
      %v570 = vsub.f32 1.0, %v569
      %v571 = vmul.f32 %v568, %v570
      %v572 = vadd.f32 %v568, %v571
      %vm573 = vweird.f32 %v536
      %vm574 = vweird.f32 %v568
      %vm575 = vmor %vm573, %vm574
      %v576 = vsel %vm575, %v568, %v572
      %v577 = vand.u32 2147483647, %v536
      %vm578 = vcmp.eq.f32.partialorder %v577, 8.507059e+37
      %v579 = vand.u32 %v536, 2147483648
      %v580 = vor.u32 1.1754944e-38, %v579
      %v581 = vsel %vm578, %v580, %v576
      %v582 = vmul.f32 1.0, %v581
      %v583 = vrcp.pop %v537
      %v584 = vmul.f32 %v537, %v583
      %v585 = vsub.f32 1.0, %v584
      %v586 = vmul.f32 %v583, %v585
      %v587 = vadd.f32 %v583, %v586
      %vm588 = vweird.f32 %v537
      %vm589 = vweird.f32 %v583
      %vm590 = vmor %vm588, %vm589
      %v591 = vsel %vm590, %v583, %v587
      %v592 = vand.u32 2147483647, %v537
      %vm593 = vcmp.eq.f32.partialorder %v592, 8.507059e+37
      %v594 = vand.u32 %v537, 2147483648
      %v595 = vor.u32 1.1754944e-38, %v594
      %v596 = vsel %vm593, %v595, %v591
      %v597 = vmul.f32 1.0, %v596
      %v598 = vmul.f32 %v430, %v552
      %v599 = vmul.f32 %v432, %v567
      %v600 = vmul.f32 %v435, %v582
      %v601 = vmul.f32 %v437, %v597
      %v602 = vmul.f32 %v598, %v513
      %v603 = vmul.f32 %v599, %v515
      %v604 = vmul.f32 %v600, %v518
      %v605 = vmul.f32 %v601, %v520
      %v606 = vpack.c.bf16 %v603, %v602
      %v607 = vpack.c.bf16 %v605, %v604
      %v608 = vld [vmem:[%s326] sm:$0xf]
      %v609 = vld [vmem:[%s326 + $0x4] sm:$0xf]
      %v610 = vld [vmem:[%s326 + $0x8] sm:$0xf]
      %v611 = vld [vmem:[%s326 + $0xc] sm:$0xf]
      %v612 = vld [vmem:[%s326 + $0x10] sm:$0xf]
      %v613 = vld [vmem:[%s326 + $0x14] sm:$0xf]
      %v614 = vld [vmem:[%s326 + $0x18] sm:$0xf]
      %v615 = vld [vmem:[%s326 + $0x1c] sm:$0xf]
      %v616 = vld [vmem:[%s326 + $0x20] sm:$0xf]
      %v617 = vld [vmem:[%s326 + $0x24] sm:$0xf]
      %v618 = vld [vmem:[%s326 + $0x28] sm:$0xf]
      %v619 = vld [vmem:[%s326 + $0x2c] sm:$0xf]
      %v620 = vld [vmem:[%s326 + $0x30] sm:$0xf]
      %v621 = vld [vmem:[%s326 + $0x34] sm:$0xf]
      %v622 = vld [vmem:[%s326 + $0x38] sm:$0xf]
      %v623 = vld [vmem:[%s326 + $0x3c] sm:$0xf]
      %v640 = vunpack.c.l.b16 %v608
      %v641 = vunpack.c.l.b16 %v609
      %v642 = vunpack.c.l.b16 %v610
      %v643 = vunpack.c.l.b16 %v611
      %v644 = vunpack.c.l.b16 %v612
      %v645 = vunpack.c.l.b16 %v613
      %v646 = vunpack.c.l.b16 %v614
      %v647 = vunpack.c.l.b16 %v615
      %v648 = vunpack.c.l.b16 %v616
      %v649 = vunpack.c.l.b16 %v617
      %v650 = vunpack.c.l.b16 %v618
      %v651 = vunpack.c.l.b16 %v619
      %v652 = vunpack.c.l.b16 %v620
      %v653 = vunpack.c.l.b16 %v621
      %v654 = vunpack.c.l.b16 %v622
      %v655 = vunpack.c.l.b16 %v623
      %v656 = vpack.c.b16 %v641, %v640
      %v657 = vpack.c.b16 %v643, %v642
      %v658 = vpack.c.b16 %v645, %v644
      %v659 = vpack.c.b16 %v647, %v646
      %v660 = vpack.c.b16 %v649, %v648
      %v661 = vpack.c.b16 %v651, %v650
      %v662 = vpack.c.b16 %v653, %v652
      %v663 = vpack.c.b16 %v655, %v654
      %672 = vmatpush.bf16.msra.mxu0 %v663
      %673 = vmatpush.bf16.msra.mxu0 %v662
      %674 = vmatpush.bf16.msra.mxu0 %v661
      %675 = vmatpush.bf16.msra.mxu0 %v660
      %676 = vmatpush.bf16.msra.mxu0 %v659
      %677 = vmatpush.bf16.msra.mxu0 %v658
      %678 = vmatpush.bf16.msra.mxu0 %v657
      %679 = vmatpush.bf16.msra.mxu0 %v656
      %680 = vmatmul.bf16.gmra.mxu0 %v606
      %v681 = vpop.f32.mrf.mxu0
      %v682 = vadd.f32 0.0, %v681
      %v683 = vpop.f32.mrf.mxu0
      %v684 = vadd.f32 0.0, %v683
      %685 = vmatmul.bf16.gmra.mxu0 %v607
      %v686 = vpop.f32.mrf.mxu0
      %v687 = vadd.f32 0.0, %v686
      %v688 = vpop.f32.mrf.mxu0
      %v689 = vadd.f32 0.0, %v688
      %690 = vdwg.mxu0
      %v691 = vld [vmem:[%s332] sm:$0xff]
      %v692 = vld [vmem:[%s332 + $0x8] sm:$0xff]
      %v693 = vld [vmem:[%s332 + $0x10] sm:$0xff]
      %v694 = vld [vmem:[%s332 + $0x18] sm:$0xff]
      %696 = vset.pattern.permute.xlu0 0
      %697 = vperm.xlu0 %696, %v691
      %v698 = vpop.permute.xlu0 %697
      %701 = vset.pattern.permute.xlu0 0
      %702 = vperm.xlu0 %701, %v692
      %v703 = vpop.permute.xlu0 %702
      %706 = vset.pattern.permute.xlu0 0
      %707 = vperm.xlu0 %706, %v693
      %v708 = vpop.permute.xlu0 %707
      %711 = vset.pattern.permute.xlu0 0
      %712 = vperm.xlu0 %711, %v694
      %v713 = vpop.permute.xlu0 %712
      %v715 = vmul.f32 %v698, %v682
      %v716 = vmul.f32 %v703, %v684
      %v717 = vmul.f32 %v708, %v687
      %v718 = vmul.f32 %v713, %v689
      %719 = vst [vmem:[%s338] sm:$0xff] %v715
      %720 = vst [vmem:[%s338 + $0x8] sm:$0xff] %v716
      %721 = vst [vmem:[%s338 + $0x10] sm:$0xff] %v717
      %722 = vst [vmem:[%s338 + $0x18] sm:$0xff] %v718
      %s723 = smul.u32 4, %s25
      %p724 = scmp.lt.s32.totalorder %s723, 63
      %s725 = scalar_select %p724, %s723, 63
      %s726 = smul.addr %s725, 8
      %s727 = scalar_lea.vmem %s6, %s726
      // Predicated region
      $region41: #{deepseek_moe.1} parent=39 // pred_check
        %p728 = pneg %p179
      $region42: #{deepseek_moe.1} parent=39 // pred_check_branch
        %730 = sbr.rel (%p728) target = $region44
      $region43: #{deepseek_moe.1} parent=39 // pred_region
        %s731 = smul.u32 4, %s25
      $region44: #{deepseek_moe.1} parent=39 // pred_fallthru
        _
    $region40: #{deepseek_moe.1} parent=5 // pred_fallthru
      _
    %p732 = scmp.le.s32.totalorder 2, %s20
    // Predicated region
    $region45: #{deepseek_moe.1} parent=5 // pred_check
      %p733 = pneg %p732
    $region46: #{deepseek_moe.1} parent=5 // pred_check_branch
      %735 = sbr.rel (%p733) target = $region48
    $region47: #{deepseek_moe.1} parent=5 // pred_region
      %s736 = ssub.s32 %s20, 2
      // Predicated region
      $region49: #{deepseek_moe.1} parent=47 // pred_check
        %p737 = pneg %p185
      $region50: #{deepseek_moe.1} parent=47 // pred_check_branch
        %739 = sbr.rel (%p737) target = $region52
      $region51: #{deepseek_moe.1} parent=47 // pred_region
        %s740 = smul.u32 4, %s26
        %p741 = scmp.lt.s32.totalorder %s740, 63
        %s742 = scalar_select %p741, %s740, 63
        %s743 = smul.addr %s742, 8
        %s744 = scalar_lea.vmem %s6, %s743
      $region52: #{deepseek_moe.1} parent=47 // pred_fallthru
        _
    $region48: #{deepseek_moe.1} parent=5 // pred_fallthru
      _
  $region6: #{deepseek_moe.1} parent=0 // loop_footer
    %s24 = sadd.s32 1, %s20
  $region7: #{deepseek_moe.1} parent=0 // loop_footer_branch
    %19 = sbr.rel target = $region3
  $region8: #{deepseek_moe.1} parent=0 // loop_exit
    _

</llo_original>
